<compile_context>
chip_gen: v5e
topology: v5e:2x2
jax: 0.10.0
libtpu: 0.0.40
codegen_flags: <defaults>
</compile_context>

<pallas_src>
import functools

import jax
import jax.numpy as jnp
from jax.experimental import pallas as pl
from jax.experimental.pallas import tpu as pltpu


def _mbd_kernel(xb_ref, xa_ref, t_ref, sel_ref, out_ref, matsb_ref, acc_ref, *,
                in_features, out_features, kernel_dims, n_valid, mean, needs_mask):
    tile_b = xb_ref.shape[0]
    tile_a = xa_ref.shape[0]
    ko = kernel_dims * out_features

    a = pl.program_id(1)
    num_a = pl.num_programs(1)

    # New b-tile: compute its fused mats once, zero the o_b accumulator.
    @pl.when(a == 0)
    def _():
        matsb_ref[...] = jnp.dot(xb_ref[...], t_ref[...],
                                 preferred_element_type=jnp.float32)
        acc_ref[...] = jnp.zeros_like(acc_ref)

    # Fused matmul for the current a-tile: (TA, F) @ (F, K*O) on the MXU.
    mats_a = jnp.dot(xa_ref[...], t_ref[...], preferred_element_type=jnp.float32)
    mats_b = matsb_ref[...]                                    # (TB, K*O)

    # Lane-dense pairwise L1 pieces: (TA, TB, K*O), minor dim K*O wide.
    diff = jnp.abs(mats_b[None, :, :] - mats_a[:, None, :])

    # Grouped k-reduce on the MXU: (TA*TB, K*O) @ (K*O, O) 0/1 selection matrix.
    norm = jnp.dot(diff.reshape(tile_a * tile_b, ko), sel_ref[...],
                   preferred_element_type=jnp.float32)         # (TA*TB, O)
    expnorm = jnp.exp(-norm).reshape(tile_a, tile_b, out_features)

    if needs_mask:
        # Zero contributions from padded a-rows (batch padded up to the tile).
        rows = jax.lax.broadcasted_iota(jnp.int32, (tile_a, tile_b), 0) + a * tile_a
        expnorm = expnorm * (rows < n_valid).astype(jnp.float32)[:, :, None]

    # Reduce over the `a` (major) axis: plain VPU adds across vregs.
    acc_ref[...] += jnp.sum(expnorm, axis=0)                   # (TB, O)

    # Last a-tile for this b-tile: finalize and write the fused [x | o_b] rows.
    @pl.when(a == num_a - 1)
    def _():
        o_b = acc_ref[...] - 1.0
        if mean:
            o_b = o_b * (1.0 / float(n_valid - 1))
        out_ref[:, :in_features] = xb_ref[...].astype(out_ref.dtype)
        out_ref[:, in_features:] = o_b.astype(out_ref.dtype)


def _round_up(v, m):
    return ((v + m - 1) // m) * m


def minibatch_discrimination(x, T, mean=False, *, block=128):
    """x: (N, in_features); T: (in_features, out_features, kernel_dims)."""
    n, in_features = x.shape
    tf, out_features, kernel_dims = T.shape
    assert tf == in_features
    ko = kernel_dims * out_features

    # (F, K*O), k-major blocks of O lanes: column k*O + o holds T[f, o, k].
    t_km = jnp.transpose(T, (0, 2, 1)).reshape(in_features, ko).astype(jnp.float32)

    # 0/1 selection matrix that sums each k-block of O lanes down to O columns.
    sel = jnp.tile(jnp.eye(out_features, dtype=jnp.float32), (kernel_dims, 1))

    # Batch tiling: keep the (tile, tile, K*O) f32 pairwise slab <= ~8 MiB so the
    # kernel stays comfortably inside v7x's 64 MiB VMEM (and the 48 MiB limit below).
    tile = min(block, _round_up(n, 8))
    while tile > 8 and tile * tile * ko * 4 > 8 * 1024 * 1024:
        tile //= 2
    n_pad = _round_up(n, tile)

    x_f32 = x.astype(jnp.float32)
    x_p = jnp.pad(x_f32, ((0, n_pad - n), (0, 0))) if n_pad != n else x_f32

    kernel = functools.partial(
        _mbd_kernel,
        in_features=in_features,
        out_features=out_features,
        kernel_dims=kernel_dims,
        n_valid=n,
        mean=mean,
        needs_mask=(n_pad != n),
    )

    grid = (n_pad // tile, n_pad // tile)  # (b tiles, a tiles); a = reduction axis

    out = pl.pallas_call(
        kernel,
        out_shape=jax.ShapeDtypeStruct((n_pad, in_features + out_features), x.dtype),
        grid_spec=pltpu.PrefetchScalarGridSpec(
            num_scalar_prefetch=0,
            grid=grid,
            in_specs=[
                pl.BlockSpec((tile, in_features), lambda b, a: (b, 0)),  # x rows (b)
                pl.BlockSpec((tile, in_features), lambda b, a: (a, 0)),  # x rows (a)
                pl.BlockSpec((in_features, ko), lambda b, a: (0, 0)),    # fused T
                pl.BlockSpec((ko, out_features), lambda b, a: (0, 0)),   # k-reduce selector
            ],
            out_specs=pl.BlockSpec(
                (tile, in_features + out_features), lambda b, a: (b, 0)
            ),
            scratch_shapes=[
                pltpu.VMEM((tile, ko), jnp.float32),            # cached mats for b tile
                pltpu.VMEM((tile, out_features), jnp.float32),  # o_b accumulator
            ],
        ),
        compiler_params=pltpu.CompilerParams(
            dimension_semantics=("parallel", "arbitrary"),
            vmem_limit_bytes=48 * 1024 * 1024,
        ),
    )(x_p, x_p, t_km, sel)

    return out[:n] if n_pad != n else out


def minibatch_discrimination_ref(x, T, mean=False):
    """Pure-JAX reference mirroring the PyTorch forward exactly."""
    n, in_features = x.shape
    _, out_features, kernel_dims = T.shape
    mats = (x @ T.reshape(in_features, out_features * kernel_dims)).reshape(
        n, out_features, kernel_dims
    )
    norm = jnp.abs(mats[None, :, :, :] - mats[:, None, :, :]).sum(axis=3)  # (N,N,O)
    expnorm = jnp.exp(-norm)
    o_b = expnorm.sum(axis=0) - 1.0
    if mean:
        o_b = o_b / (n - 1)
    return jnp.concatenate([x, o_b], axis=1)


if __name__ == "__main__":
    key = jax.random.PRNGKey(0)
    kx, kt = jax.random.split(key)

    in_features, out_features, kernel_dims = 32, 16, 8
    # Scale T so exp(-norm) lands in a numerically meaningful range for the check.
    T = 0.1 * jax.random.normal(
        kt, (in_features, out_features, kernel_dims), dtype=jnp.float32
    )

    # Second config exercises batch padding + masking and the `mean` branch.
    for batch, mean in ((8, False), (10, True)):
        x = jax.random.normal(
            jax.random.fold_in(kx, batch), (batch, in_features), dtype=jnp.float32
        )
        out = jax.block_until_ready(minibatch_discrimination(x, T, mean=mean))
        ref = minibatch_discrimination_ref(x, T, mean=mean)
        assert out.shape == (batch, in_features + out_features)
        assert jnp.allclose(out, ref, atol=2e-5, rtol=1e-4), (
            f"batch={batch} mean={mean} max abs err = {jnp.max(jnp.abs(out - ref))}"
        )
    print("KERNEL_OK")
</pallas_src>

<mosaic_0001>
module attributes {stable_mosaic.version = 11 : i64} {
  func.func @_mbd_kernel(%arg0: i32, %arg1: i32, %arg2: memref<8x32xf32, #tpu.memory_space<vmem>>, %arg3: memref<8x32xf32, #tpu.memory_space<vmem>>, %arg4: memref<32x128xf32, #tpu.memory_space<vmem>>, %arg5: memref<128x16xf32, #tpu.memory_space<vmem>>, %arg6: memref<8x48xf32, #tpu.memory_space<vmem>>, %arg7: memref<8x128xf32, #tpu.memory_space<vmem>>, %arg8: memref<8x16xf32, #tpu.memory_space<vmem>>) attributes {dimension_semantics = [#tpu.dimension_semantics<parallel>, #tpu.dimension_semantics<arbitrary>], iteration_bounds = array<i64: 1, 1>, scalar_prefetch = 0 : i64, scratch_operands = 2 : i64, tpu.core_type = #tpu.core_type<tc>, window_params = [{transform_indices = @transform_0, window_bounds = array<i64: 8, 32>}, {transform_indices = @transform_1, window_bounds = array<i64: 8, 32>}, {pipeline_mode = #tpu.pipeline_mode<synchronous>, transform_indices = @transform_2, window_bounds = array<i64: 32, 128>}, {pipeline_mode = #tpu.pipeline_mode<synchronous>, transform_indices = @transform_3, window_bounds = array<i64: 128, 16>}, {transform_indices = @transform_4, window_bounds = array<i64: 8, 48>}]} {
    %c0_i32 = arith.constant 0 : i32
    %0 = arith.cmpi eq, %arg1, %c0_i32 : i32
    %1 = arith.extui %0 : i1 to i32
    %c0_i32_0 = arith.constant 0 : i32
    %2 = arith.cmpi ne, %1, %c0_i32_0 : i32
    scf.if %2 {
      %c0_17 = arith.constant 0 : index
      %c0_18 = arith.constant 0 : index
      %27 = vector.load %arg2[%c0_17, %c0_18] : memref<8x32xf32, #tpu.memory_space<vmem>>, vector<8x32xf32>
      %c0_19 = arith.constant 0 : index
      %c0_20 = arith.constant 0 : index
      %28 = vector.load %arg4[%c0_19, %c0_20] : memref<32x128xf32, #tpu.memory_space<vmem>>, vector<32x128xf32>
      %cst_21 = arith.constant dense<0.000000e+00> : vector<8x128xf32>
      %29 = tpu.matmul %27, %28, %cst_21 {dimension_numbers = #tpu.dot_dimension_numbers<[1], [0], [0], [1], [0, 0, 1, 1], [], []>} : vector<8x32xf32>, vector<32x128xf32>, vector<8x128xf32> -> vector<8x128xf32>
      %c0_22 = arith.constant 0 : index
      %c0_23 = arith.constant 0 : index
      %30 = vector.load %arg7[%c0_22, %c0_23] : memref<8x128xf32, #tpu.memory_space<vmem>>, vector<8x128xf32>
      tpu.vector_store %arg7[%c0_22, %c0_23], %29 {strides = array<i32>} : memref<8x128xf32, #tpu.memory_space<vmem>>, vector<8x128xf32>,
      %cst_24 = arith.constant 0.000000e+00 : f32
      %31 = vector.broadcast %cst_24 : f32 to vector<8x16xf32>
      %c0_25 = arith.constant 0 : index
      %c0_26 = arith.constant 0 : index
      %32 = vector.load %arg8[%c0_25, %c0_26] : memref<8x16xf32, #tpu.memory_space<vmem>>, vector<8x16xf32>
      tpu.vector_store %arg8[%c0_25, %c0_26], %31 {strides = array<i32>} : memref<8x16xf32, #tpu.memory_space<vmem>>, vector<8x16xf32>,
    } else {
    }
    %c0 = arith.constant 0 : index
    %c0_1 = arith.constant 0 : index
    %3 = vector.load %arg3[%c0, %c0_1] : memref<8x32xf32, #tpu.memory_space<vmem>>, vector<8x32xf32>
    %c0_2 = arith.constant 0 : index
    %c0_3 = arith.constant 0 : index
    %4 = vector.load %arg4[%c0_2, %c0_3] : memref<32x128xf32, #tpu.memory_space<vmem>>, vector<32x128xf32>
    %cst = arith.constant dense<0.000000e+00> : vector<8x128xf32>
    %5 = tpu.matmul %3, %4, %cst {dimension_numbers = #tpu.dot_dimension_numbers<[1], [0], [0], [1], [0, 0, 1, 1], [], []>} : vector<8x32xf32>, vector<32x128xf32>, vector<8x128xf32> -> vector<8x128xf32>
    %c0_4 = arith.constant 0 : index
    %c0_5 = arith.constant 0 : index
    %6 = vector.load %arg7[%c0_4, %c0_5] : memref<8x128xf32, #tpu.memory_space<vmem>>, vector<8x128xf32>
    %7 = vector.shape_cast %6 : vector<8x128xf32> to vector<1x8x128xf32>
    %8 = vector.shape_cast %5 : vector<8x128xf32> to vector<8x1x128xf32>
    %9 = vector.broadcast %7 : vector<1x8x128xf32> to vector<8x8x128xf32>
    %10 = vector.broadcast %8 : vector<8x1x128xf32> to vector<8x8x128xf32>
    %11 = arith.subf %9, %10 : vector<8x8x128xf32>
    %12 = math.absf %11 : vector<8x8x128xf32>
    %13 = vector.shape_cast %12 : vector<8x8x128xf32> to vector<64x128xf32>
    %c0_6 = arith.constant 0 : index
    %c0_7 = arith.constant 0 : index
    %14 = vector.load %arg5[%c0_6, %c0_7] : memref<128x16xf32, #tpu.memory_space<vmem>>, vector<128x16xf32>
    %cst_8 = arith.constant dense<0.000000e+00> : vector<64x16xf32>
    %15 = tpu.matmul %13, %14, %cst_8 {dimension_numbers = #tpu.dot_dimension_numbers<[1], [0], [0], [1], [0, 0, 1, 1], [], []>} : vector<64x128xf32>, vector<128x16xf32>, vector<64x16xf32> -> vector<64x16xf32>
    %cst_9 = arith.constant 0.000000e+00 : f32
    %16 = vector.broadcast %cst_9 : f32 to vector<64x16xf32>
    %17 = arith.subf %16, %15 : vector<64x16xf32>
    %18 = math.exp %17 : vector<64x16xf32>
    %19 = vector.shape_cast %18 : vector<64x16xf32> to vector<8x8x16xf32>
    %c0_10 = arith.constant 0 : index
    %c0_11 = arith.constant 0 : index
    %20 = vector.load %arg8[%c0_10, %c0_11] : memref<8x16xf32, #tpu.memory_space<vmem>>, vector<8x16xf32>
    %cst_12 = arith.constant dense<0.000000e+00> : vector<8x16xf32>
    %21 = vector.multi_reduction <add>, %19, %cst_12 [0] : vector<8x8x16xf32> to vector<8x16xf32>
    %22 = arith.addf %20, %21 : vector<8x16xf32>
    %c0_13 = arith.constant 0 : index
    %c0_14 = arith.constant 0 : index
    %23 = vector.load %arg8[%c0_13, %c0_14] : memref<8x16xf32, #tpu.memory_space<vmem>>, vector<8x16xf32>
    tpu.vector_store %arg8[%c0_13, %c0_14], %22 {strides = array<i32>} : memref<8x16xf32, #tpu.memory_space<vmem>>, vector<8x16xf32>,
    %c0_i32_15 = arith.constant 0 : i32
    %24 = arith.cmpi eq, %arg1, %c0_i32_15 : i32
    %25 = arith.extui %24 : i1 to i32
    %c0_i32_16 = arith.constant 0 : i32
    %26 = arith.cmpi ne, %25, %c0_i32_16 : i32
    scf.if %26 {
      %c0_17 = arith.constant 0 : index
      %c0_18 = arith.constant 0 : index
      %27 = vector.load %arg8[%c0_17, %c0_18] : memref<8x16xf32, #tpu.memory_space<vmem>>, vector<8x16xf32>
      %cst_19 = arith.constant 1.000000e+00 : f32
      %28 = vector.broadcast %cst_19 : f32 to vector<8x16xf32>
      %29 = arith.subf %27, %28 : vector<8x16xf32>
      %c0_20 = arith.constant 0 : index
      %c0_21 = arith.constant 0 : index
      %30 = vector.load %arg2[%c0_20, %c0_21] : memref<8x32xf32, #tpu.memory_space<vmem>>, vector<8x32xf32>
      %c0_22 = arith.constant 0 : index
      %c0_23 = arith.constant 0 : index
      %31 = vector.load %arg6[%c0_22, %c0_23] : memref<8x48xf32, #tpu.memory_space<vmem>>, vector<8x32xf32>
      tpu.vector_store %arg6[%c0_22, %c0_23], %30 {strides = array<i32>} : memref<8x48xf32, #tpu.memory_space<vmem>>, vector<8x32xf32>,
      %c0_24 = arith.constant 0 : index
      %c32 = arith.constant 32 : index
      %32 = vector.load %arg6[%c0_24, %c32] : memref<8x48xf32, #tpu.memory_space<vmem>>, vector<8x16xf32>
      tpu.vector_store %arg6[%c0_24, %c32], %29 {strides = array<i32>} : memref<8x48xf32, #tpu.memory_space<vmem>>, vector<8x16xf32>,
    } else {
    }
    return
  }
  func.func @transform_0(%arg0: i32, %arg1: i32) -> (i32, i32) {
    %c0_i32 = arith.constant 0 : i32
    %c0_i32_0 = arith.constant 0 : i32
    return %arg0, %c0_i32 : i32, i32
  }
  func.func @transform_1(%arg0: i32, %arg1: i32) -> (i32, i32) {
    %c0_i32 = arith.constant 0 : i32
    %c0_i32_0 = arith.constant 0 : i32
    return %arg1, %c0_i32 : i32, i32
  }
  func.func @transform_2(%arg0: i32, %arg1: i32) -> (i32, i32) {
    %c0_i32 = arith.constant 0 : i32
    %c0_i32_0 = arith.constant 0 : i32
    %c0_i32_1 = arith.constant 0 : i32
    return %c0_i32, %c0_i32_0 : i32, i32
  }
  func.func @transform_3(%arg0: i32, %arg1: i32) -> (i32, i32) {
    %c0_i32 = arith.constant 0 : i32
    %c0_i32_0 = arith.constant 0 : i32
    %c0_i32_1 = arith.constant 0 : i32
    return %c0_i32, %c0_i32_0 : i32, i32
  }
  func.func @transform_4(%arg0: i32, %arg1: i32) -> (i32, i32) {
    %c0_i32 = arith.constant 0 : i32
    %c0_i32_0 = arith.constant 0 : i32
    return %arg0, %c0_i32 : i32, i32
  }
}

</mosaic_0001>

<llo_original>
// kernel: tpu_custom_call.1
$region0: #{tpu_custom_call.1}
  #allocation0 [shape = 'u32[]', space=smem, size = 0x4, offset = 0x4, fixed_abs, tag = 'smem constant byte address 0x4 - core index']
  #allocation1 [shape = 'u32[72,128]{1,0:T(1,128)}', space=vmem, size = 0x9000, scoped, tag = 'internal scratch']
  #allocation2 [shape = 'f32[8,128]{1,0:T(8,128)}', space=vmem, size = 0x1000, scoped, tag = 'scratch operand']
  #allocation3 [shape = 'f32[8,16]{1,0:T(8,128)}', space=vmem, size = 0x1000, scoped, tag = 'scratch operand']
  %s0 = inlined_call_operand.vmem [shape: f32[8,32], index: 0, kind: input, shape index: {}]
  %s1 = inlined_call_operand.vmem [shape: f32[8,32], index: 1, kind: input, shape index: {}]
  %s2 = inlined_call_operand.vmem [shape: f32[32,128], index: 2, kind: input, shape index: {}]
  %s3 = inlined_call_operand.vmem [shape: f32[128,16], index: 3, kind: input, shape index: {}]
  %s4 = inlined_call_operand.hbm [shape: f32[8,48], index: 4, kind: output, shape index: {}]
  %s5 = sld [smem:[#allocation0]]
  $region34: #{tpu_custom_call.1} parent=0
    _
  %s7 = ssub.s32 1, %s5
  %s8 = scalar_select 0, %s7, %s5
  $region1: #{tpu_custom_call.1} parent=0
    #allocation4 [shape = 'u8[4096]{0}', space=vmem, size = 0x1000, scoped, tag = 'output window, operand 0, single buffered']
    #allocation5 [shape = 's32[1]{0}', space=sflag, size = 0x4, scoped, tag = 'scoped memory for tpu_custom_call.1']
    %9 = vsyncpa [#allocation5], 0
    // Predicated region
    $region2: #{tpu_custom_call.1} parent=1 // pred_check
      _
    $region3: #{tpu_custom_call.1} parent=1 // pred_check_branch
      %11 = sbr.rel (0) target = $region5
    $region4: #{tpu_custom_call.1} parent=1 // pred_region
      _
    $region5: #{tpu_custom_call.1} parent=1 // pred_fallthru
      _
    // Predicated region
    $region6: #{tpu_custom_call.1} parent=1 // pred_check
      _
    $region7: #{tpu_custom_call.1} parent=1 // pred_check_branch
      %13 = sbr.rel (0) target = $region9
    $region8: #{tpu_custom_call.1} parent=1 // pred_region
      _
    $region9: #{tpu_custom_call.1} parent=1 // pred_fallthru
      _
    // Predicated region
    $region10: #{tpu_custom_call.1} parent=1 // pred_check
      _
    $region11: #{tpu_custom_call.1} parent=1 // pred_check_branch
      %15 = sbr.rel (0) target = $region13
    $region12: #{tpu_custom_call.1} parent=1 // pred_region
      _
    $region13: #{tpu_custom_call.1} parent=1 // pred_fallthru
      _
    // Predicated region
    $region14: #{tpu_custom_call.1} parent=1 // pred_check
      _
    $region15: #{tpu_custom_call.1} parent=1 // pred_check_branch
      %17 = sbr.rel (0) target = $region17
    $region16: #{tpu_custom_call.1} parent=1 // pred_region
      _
    $region17: #{tpu_custom_call.1} parent=1 // pred_fallthru
      _
    %p18 = scmp.eq.s32.totalorder 0, 0
    // Predicated region
    $region18: #{tpu_custom_call.1} parent=1 // pred_check
      %p19 = pneg %p18
    $region19: #{tpu_custom_call.1} parent=1 // pred_check_branch
      %21 = sbr.rel (%p19) target = $region21
    $region20: #{tpu_custom_call.1} parent=1 // pred_region
      %v22 = vld [vmem:[%s0] sm:$0xff]
      %v23 = vld [vmem:[%s2] sm:$0xff]
      %v24 = vld [vmem:[%s2 + $0x8] sm:$0xff]
      %v25 = vld [vmem:[%s2 + $0x10] sm:$0xff]
      %v26 = vld [vmem:[%s2 + $0x18] sm:$0xff]
      %vm27 = vcmask 261120
      %v29 = vsel %vm27, %v22, 0
      %31 = vmatpush.msra.mxu0 0.0
      %32 = vmatpush.msra.mxu0 0.0
      %33 = vmatpush.msra.mxu0 0.0
      %34 = vmatpush.msra.mxu0 0.0
      %35 = vmatpush.msra.mxu0 0.0
      %36 = vmatpush.msra.mxu0 0.0
      %37 = vmatpush.msra.mxu0 0.0
      %38 = vmatpush.msra.mxu0 0.0
      %39 = vmatpush.msra.mxu0 0.0
      %40 = vmatpush.msra.mxu0 0.0
      %41 = vmatpush.msra.mxu0 0.0
      %42 = vmatpush.msra.mxu0 0.0
      %43 = vmatpush.msra.mxu0 %v26
      %44 = vmatpush.msra.mxu0 %v25
      %45 = vmatpush.msra.mxu0 %v24
      %46 = vmatpush.msra.mxu0 %v23
      %47 = vmatmul.f32.gmra.mxu0 %v29
      %v48 = vpop.f32.mrf.mxu0
      %v49 = vadd.f32 0.0, %v48
      %50 = vdwg.mxu0
      %51 = vst [vmem:[#allocation2] sm:$0xff] %v49
      %vm52 = vcmask 130048
      %53 = vst.msk [vmem:[#allocation3] sm:$0xff] %vm52, 0.0
    $region21: #{tpu_custom_call.1} parent=1 // pred_fallthru
      _
    %v54 = vld [vmem:[%s1] sm:$0xff]
    %v55 = vld [vmem:[%s2] sm:$0xff]
    %v56 = vld [vmem:[%s2 + $0x8] sm:$0xff]
    %v57 = vld [vmem:[%s2 + $0x10] sm:$0xff]
    %v58 = vld [vmem:[%s2 + $0x18] sm:$0xff]
    %vm59 = vcmask 261120
    %v61 = vsel %vm59, %v54, 0
    %63 = vmatpush.msra.mxu0 0.0
    %64 = vmatpush.msra.mxu0 0.0
    %65 = vmatpush.msra.mxu0 0.0
    %66 = vmatpush.msra.mxu0 0.0
    %67 = vmatpush.msra.mxu0 0.0
    %68 = vmatpush.msra.mxu0 0.0
    %69 = vmatpush.msra.mxu0 0.0
    %70 = vmatpush.msra.mxu0 0.0
    %71 = vmatpush.msra.mxu0 0.0
    %72 = vmatpush.msra.mxu0 0.0
    %73 = vmatpush.msra.mxu0 0.0
    %74 = vmatpush.msra.mxu0 0.0
    %75 = vmatpush.msra.mxu0 %v58
    %76 = vmatpush.msra.mxu0 %v57
    %77 = vmatpush.msra.mxu0 %v56
    %78 = vmatpush.msra.mxu0 %v55
    %79 = vmatmul.f32.gmra.mxu0 %v61
    %v80 = vpop.f32.mrf.mxu0
    %v81 = vadd.f32 0.0, %v80
    %82 = vdwg.mxu0
    %v83 = vld [vmem:[#allocation2] sm:$0xff]
    %v85 = vrot.slane %v81, 1
    %v86 = vrot.slane %v81, 2
    %v87 = vrot.slane %v81, 3
    %v88 = vrot.slane %v81, 4
    %v89 = vrot.slane %v81, 5
    %v90 = vrot.slane %v81, 6
    %v91 = vrot.slane %v81, 7
    %v92 = vperm.slane %v81, 0
    %v93 = vperm.slane %v85, 0
    %v94 = vperm.slane %v86, 0
    %v95 = vperm.slane %v87, 0
    %v96 = vperm.slane %v88, 0
    %v97 = vperm.slane %v89, 0
    %v98 = vperm.slane %v90, 0
    %v99 = vperm.slane %v91, 0
    %v108 = vsub.f32 %v83, %v92
    %v109 = vsub.f32 %v83, %v93
    %v110 = vsub.f32 %v83, %v94
    %v111 = vsub.f32 %v83, %v95
    %v112 = vsub.f32 %v83, %v96
    %v113 = vsub.f32 %v83, %v97
    %v114 = vsub.f32 %v83, %v98
    %v115 = vsub.f32 %v83, %v99
    %v116 = vand.u32 2147483647, %v108
    %v117 = vand.u32 2147483647, %v109
    %v118 = vand.u32 2147483647, %v110
    %v119 = vand.u32 2147483647, %v111
    %v120 = vand.u32 2147483647, %v112
    %v121 = vand.u32 2147483647, %v113
    %v122 = vand.u32 2147483647, %v114
    %v123 = vand.u32 2147483647, %v115
    %v124 = vld [vmem:[%s3] sm:$0xff]
    %v125 = vld [vmem:[%s3 + $0x8] sm:$0xff]
    %v126 = vld [vmem:[%s3 + $0x10] sm:$0xff]
    %v127 = vld [vmem:[%s3 + $0x18] sm:$0xff]
    %v128 = vld [vmem:[%s3 + $0x20] sm:$0xff]
    %v129 = vld [vmem:[%s3 + $0x28] sm:$0xff]
    %v130 = vld [vmem:[%s3 + $0x30] sm:$0xff]
    %v131 = vld [vmem:[%s3 + $0x38] sm:$0xff]
    %v132 = vld [vmem:[%s3 + $0x40] sm:$0xff]
    %v133 = vld [vmem:[%s3 + $0x48] sm:$0xff]
    %v134 = vld [vmem:[%s3 + $0x50] sm:$0xff]
    %v135 = vld [vmem:[%s3 + $0x58] sm:$0xff]
    %v136 = vld [vmem:[%s3 + $0x60] sm:$0xff]
    %v137 = vld [vmem:[%s3 + $0x68] sm:$0xff]
    %v138 = vld [vmem:[%s3 + $0x70] sm:$0xff]
    %v139 = vld [vmem:[%s3 + $0x78] sm:$0xff]
    %140 = vmatpush.msra.mxu0 %v139
    %141 = vmatpush.msra.mxu0 %v138
    %142 = vmatpush.msra.mxu0 %v137
    %143 = vmatpush.msra.mxu0 %v136
    %144 = vmatpush.msra.mxu0 %v135
    %145 = vmatpush.msra.mxu0 %v134
    %146 = vmatpush.msra.mxu0 %v133
    %147 = vmatpush.msra.mxu0 %v132
    %148 = vmatpush.msra.mxu0 %v131
    %149 = vmatpush.msra.mxu0 %v130
    %150 = vmatpush.msra.mxu0 %v129
    %151 = vmatpush.msra.mxu0 %v128
    %152 = vmatpush.msra.mxu0 %v127
    %153 = vmatpush.msra.mxu0 %v126
    %154 = vmatpush.msra.mxu0 %v125
    %155 = vmatpush.msra.mxu0 %v124
    %156 = vmatmul.f32.gmra.mxu0 %v116
    %v157 = vpop.f32.mrf.mxu0
    %v158 = vadd.f32 0.0, %v157
    %159 = vmatmul.f32.gmra.mxu0 %v117
    %v160 = vpop.f32.mrf.mxu0
    %v161 = vadd.f32 0.0, %v160
    %162 = vmatmul.f32.gmra.mxu0 %v118
    %v163 = vpop.f32.mrf.mxu0
    %v164 = vadd.f32 0.0, %v163
    %165 = vmatmul.f32.gmra.mxu0 %v119
    %v166 = vpop.f32.mrf.mxu0
    %v167 = vadd.f32 0.0, %v166
    %168 = vmatmul.f32.gmra.mxu0 %v120
    %v169 = vpop.f32.mrf.mxu0
    %v170 = vadd.f32 0.0, %v169
    %171 = vmatmul.f32.gmra.mxu0 %v121
    %v172 = vpop.f32.mrf.mxu0
    %v173 = vadd.f32 0.0, %v172
    %174 = vmatmul.f32.gmra.mxu0 %v122
    %v175 = vpop.f32.mrf.mxu0
    %v176 = vadd.f32 0.0, %v175
    %177 = vmatmul.f32.gmra.mxu0 %v123
    %v178 = vpop.f32.mrf.mxu0
    %v179 = vadd.f32 0.0, %v178
    %180 = vdwg.mxu0
    %v181 = vsub.f32 0.0, %v158
    %v182 = vsub.f32 0.0, %v161
    %v183 = vsub.f32 0.0, %v164
    %v184 = vsub.f32 0.0, %v167
    %v185 = vsub.f32 0.0, %v170
    %v186 = vsub.f32 0.0, %v173
    %v187 = vsub.f32 0.0, %v176
    %v188 = vsub.f32 0.0, %v179
    %v189 = vmul.f32 %v181, 1.442695
    %v190 = vpow.pop %v189
    %v191 = vmul.f32 %v182, 1.442695
    %v192 = vpow.pop %v191
    %v193 = vmul.f32 %v183, 1.442695
    %v194 = vpow.pop %v193
    %v195 = vmul.f32 %v184, 1.442695
    %v196 = vpow.pop %v195
    %v197 = vmul.f32 %v185, 1.442695
    %v198 = vpow.pop %v197
    %v199 = vmul.f32 %v186, 1.442695
    %v200 = vpow.pop %v199
    %v201 = vmul.f32 %v187, 1.442695
    %v202 = vpow.pop %v201
    %v203 = vmul.f32 %v188, 1.442695
    %v204 = vpow.pop %v203
    %v205 = vld [vmem:[#allocation3] sm:$0xff]
    %vm206 = vcmask 130048
    %v207 = vsel %vm206, %v190, 0.0
    %v208 = vsel %vm206, %v192, 0.0
    %v209 = vadd.f32 %v207, %v208
    %v210 = vsel %vm206, %v194, 0.0
    %v211 = vadd.f32 %v209, %v210
    %v212 = vsel %vm206, %v196, 0.0
    %v213 = vadd.f32 %v211, %v212
    %v214 = vsel %vm206, %v198, 0.0
    %v215 = vadd.f32 %v213, %v214
    %v216 = vsel %vm206, %v200, 0.0
    %v217 = vadd.f32 %v215, %v216
    %v218 = vsel %vm206, %v202, 0.0
    %v219 = vadd.f32 %v217, %v218
    %v220 = vsel %vm206, %v204, 0.0
    %v221 = vadd.f32 %v219, %v220
    %v222 = vadd.f32 %v205, %v221
    %223 = vst.msk [vmem:[#allocation3] sm:$0xff] %vm206, %v222
    // Predicated region
    $region22: #{tpu_custom_call.1} parent=1 // pred_check
      %p224 = pneg %p18
    $region23: #{tpu_custom_call.1} parent=1 // pred_check_branch
      %226 = sbr.rel (%p224) target = $region25
    $region24: #{tpu_custom_call.1} parent=1 // pred_region
      %v227 = vld [vmem:[#allocation3] sm:$0xff]
      %v228 = vsub.f32 %v227, 1.0
      %v229 = vld [vmem:[%s0] sm:$0xff]
      %230 = vst.msk [vmem:[#allocation4] sm:$0xff] %vm59, %v229
      %232 = vrot.lane.b32.xlu0 %v228, 32
      %v233 = vpop.permute.xlu0 %232
      %vm235 = vcmask 392448
      %236 = vst.msk [vmem:[#allocation4] sm:$0xff] %vm235, %v233
    $region25: #{tpu_custom_call.1} parent=1 // pred_fallthru
      _
    // Predicated region
    $region26: #{tpu_custom_call.1} parent=1 // pred_check
      _
    $region27: #{tpu_custom_call.1} parent=1 // pred_check_branch
      %238 = sbr.rel (0) target = $region29
    $region28: #{tpu_custom_call.1} parent=1 // pred_region
      %240 = vsyncadd [#allocation5], 0
      %s242 = sshll.u32 [#allocation4], 4
      %s243 = int_to_ptr.vmem [resolvable:$true] %s242
      %s244 = sshll.u32 %s4, 4
      %s245 = int_to_ptr.hbm [resolvable:$true] %s244
      %247 = dma.vmem_to_hbm [thread:$0]  %s243, 128, %s245, [#allocation5]
    $region29: #{tpu_custom_call.1} parent=1 // pred_fallthru
      _
    // Predicated region
    $region30: #{tpu_custom_call.1} parent=1 // pred_check
      _
    $region31: #{tpu_custom_call.1} parent=1 // pred_check_branch
      %249 = sbr.rel (0) target = $region33
    $region32: #{tpu_custom_call.1} parent=1 // pred_region
      %251 = dma.done [#allocation5], 128
    $region33: #{tpu_custom_call.1} parent=1 // pred_fallthru
      _
    %252 = vsyncpa [#allocation5], 1

</llo_original>
